<compile_context>
chip_gen: v5e
topology: v5e:2x2
jax: 0.10.0
libtpu: 0.0.40
codegen_flags: <defaults>
</compile_context>

<pallas_src>
import math

import jax
import jax.numpy as jnp
from jax import lax
from jax.experimental import pallas as pl
from jax.experimental.pallas import tpu as pltpu


def _round_up(n, m):
    return ((n + m - 1) // m) * m


def _invariant_spec(shape, single_buffer):
    """BlockSpec for a grid-invariant (weight/bias) block.

    Grid-invariant blocks are fetched once; requesting a single buffer halves
    their VMEM footprint.  Falls back to the default (double-buffered) spec if
    this jax build does not accept pipeline_mode / Buffered(1).
    """
    idx = lambda i: (0,) * len(shape)
    if single_buffer:
        try:
            return pl.BlockSpec(shape, idx, pipeline_mode=pl.Buffered(1))
        except Exception:
            pass
    return pl.BlockSpec(shape, idx)


# ----------------------------------------------------------------------------
# Parameter init (matches BuildClassification._initialize_weights:
# kaiming_uniform_(a=0.01) on weights, bias = 0), pre-transposed / split /
# padded into the fused-kernel layout.
# ----------------------------------------------------------------------------
def kaiming_uniform(key, shape, fan_in, a=0.01):
    gain = math.sqrt(2.0 / (1.0 + a * a))
    bound = gain * math.sqrt(3.0 / fan_in)
    return jax.random.uniform(key, shape, jnp.float32, -bound, bound)


def init_params(key, levels_size, input_size, hidden_size,
                compute_dtype=jnp.bfloat16):
    """Padded params in the fused-kernel layout.

    Returns a dict:
      w1x_all : (d_pad, n_levels*h_pad)  compute_dtype   x-part of every W1^T
      w1oh    : tuple of (c_pad, h_pad)  compute_dtype   one-hot part (levels>=1)
      w2      : tuple of (h_pad, c_pad)  compute_dtype
      bias    : (round_up(2*n_levels,8), max(h_pad,c_pad)) f32
                row 2*i = b1_i (cols :h_pad), row 2*i+1 = b2_i (cols :c_pad)
    """
    levels_size = tuple(int(s) for s in levels_size)
    n_levels = len(levels_size)
    d_pad = _round_up(input_size, 128)
    h_pad = _round_up(hidden_size, 128)
    c_pad = _round_up(max(levels_size), 128)
    bias_rows = _round_up(2 * n_levels, 8)
    bias_cols = max(h_pad, c_pad)

    w1x_cols, w1oh_list, w2_list = [], [], []
    bias = jnp.zeros((bias_rows, bias_cols), jnp.float32)  # torch init: bias=0

    prev = 0
    for i, level_size in enumerate(levels_size):
        in_dim = input_size + prev
        key, k1, k2 = jax.random.split(key, 3)
        # torch nn.Linear weight is (out, in); forward input is [onehot | x].
        w1 = kaiming_uniform(k1, (hidden_size, in_dim), fan_in=in_dim)
        w2 = kaiming_uniform(k2, (level_size, hidden_size), fan_in=hidden_size)

        w1t = w1.T  # (in_dim, hidden): rows [:prev] act on onehot, [prev:] on x
        w1x = jnp.zeros((d_pad, h_pad), jnp.float32)
        w1x = w1x.at[:input_size, :hidden_size].set(w1t[prev:])
        w1x_cols.append(w1x)

        if i > 0:
            w1oh = jnp.zeros((c_pad, h_pad), jnp.float32)
            w1oh = w1oh.at[:prev, :hidden_size].set(w1t[:prev])
            w1oh_list.append(w1oh.astype(compute_dtype))

        w2t = jnp.zeros((h_pad, c_pad), jnp.float32)
        w2t = w2t.at[:hidden_size, :level_size].set(w2.T)
        w2_list.append(w2t.astype(compute_dtype))
        prev = level_size

    w1x_all = jnp.concatenate(w1x_cols, axis=1).astype(compute_dtype)
    return {"w1x_all": w1x_all, "w1oh": tuple(w1oh_list),
            "w2": tuple(w2_list), "bias": bias}


# ----------------------------------------------------------------------------
# Fused kernel + jitted wrapper
# ----------------------------------------------------------------------------
def make_hmc_forward(levels_size, input_size, hidden_size, *,
                     compute_dtype=jnp.bfloat16, batch_tile=512,
                     single_buffer_weights=True):
    levels_size = tuple(int(s) for s in levels_size)
    n_levels = len(levels_size)
    n_oh = n_levels - 1
    d_pad = _round_up(input_size, 128)
    h_pad = _round_up(hidden_size, 128)
    c_pad = _round_up(max(levels_size), 128)
    bias_rows = _round_up(2 * n_levels, 8)
    bias_cols = max(h_pad, c_pad)
    cd = jnp.dtype(compute_dtype).itemsize
    sublane = 16 if cd == 2 else 8  # keep bf16 blocks on native (16,128) tiles

    # Clamp the VMEM hint to the real per-core capacity (v7x has only 64 MiB).
    try:
        vmem_cap = int(pltpu.get_tpu_info().vmem_capacity_bytes)
    except Exception:
        vmem_cap = 64 * 1024 * 1024  # conservative (v7x per-TensorCore)

    def fused_kernel(x_ref, w1x_ref, bias_ref, *args):
        w1oh_refs = args[:n_oh]
        w2_refs = args[n_oh:n_oh + n_levels]
        out_ref = args[n_oh + n_levels]
        oh_ref = args[n_oh + n_levels + 1]  # (tb, c_pad) compute_dtype scratch

        tb = x_ref.shape[0]
        bias = bias_ref[...]  # tiny, load once

        # x-contribution of EVERY level's first Linear in one wide MXU matmul
        # (bf16 operands, f32 accumulation).
        hx_all = jnp.dot(x_ref[...], w1x_ref[...],
                         preferred_element_type=jnp.float32)

        # Hoisted iota shared by every level's argmax / one-hot epilogue.
        col = lax.broadcasted_iota(jnp.int32, (tb, c_pad), 1)

        for i, level_size in enumerate(levels_size):
            b1 = bias[2 * i:2 * i + 1, :h_pad]
            b2 = bias[2 * i + 1:2 * i + 2, :c_pad]

            h = hx_all[:, i * h_pad:(i + 1) * h_pad] + b1
            if i > 0:
                # one-hot prefix of the previous level (0/1, exact in bf16)
                h = h + jnp.dot(oh_ref[...], w1oh_refs[i - 1][...],
                                preferred_element_type=jnp.float32)
            logits = jnp.dot(h.astype(compute_dtype), w2_refs[i][...],
                             preferred_element_type=jnp.float32) + b2
            out_ref[:, i * c_pad:(i + 1) * c_pad] = logits

            if i + 1 < n_levels:
                # OutputNormalization: one_hot(argmax(logits, dim=1)).
                # Padded lanes masked with -inf so they never win; ties resolve
                # to the first maximal index (torch.argmax semantics).
                valid = col < level_size
                masked = jnp.where(valid, logits, -jnp.inf)
                row_max = jnp.max(masked, axis=1, keepdims=True)
                first_idx = jnp.min(jnp.where(masked == row_max, col, c_pad),
                                    axis=1, keepdims=True)
                oh_ref[...] = (col == first_idx).astype(oh_ref.dtype)

    def forward(x, params):
        w1x_all = params["w1x_all"]
        bias = params["bias"]
        w1oh = params["w1oh"]
        w2 = params["w2"]

        batch = x.shape[0]
        # Balanced batch tiling: minimise padding waste and (when the batch is
        # large enough) guarantee >=2 grid programs for v7x's two TensorCores.
        n_tiles = max(1, -(-batch // batch_tile))
        if n_tiles == 1 and batch > sublane:
            n_tiles = 2
        tb = _round_up(-(-batch // n_tiles), sublane)
        b_pad = tb * n_tiles

        # Pad AND cast x in the wrapper -> bf16 HBM->VMEM stream, no in-kernel cast.
        x_pad = jnp.zeros((b_pad, d_pad), compute_dtype)
        x_pad = x_pad.at[:batch, :input_size].set(x.astype(compute_dtype))

        w_bytes = ((d_pad * n_levels * h_pad
                    + n_oh * c_pad * h_pad
                    + n_levels * h_pad * c_pad) * cd
                   + bias_rows * bias_cols * 4)
        flops = (2 * b_pad * d_pad * n_levels * h_pad
                 + 2 * b_pad * c_pad * h_pad * n_oh
                 + 2 * b_pad * h_pad * c_pad * n_levels)
        bytes_accessed = (b_pad * d_pad * cd + w_bytes
                          + b_pad * n_levels * c_pad * 4)

        in_specs = [pl.BlockSpec((tb, d_pad), lambda i: (i, 0)),
                    _invariant_spec((d_pad, n_levels * h_pad),
                                    single_buffer_weights),
                    _invariant_spec((bias_rows, bias_cols),
                                    single_buffer_weights)]
        in_specs += [_invariant_spec((c_pad, h_pad), single_buffer_weights)
                     for _ in range(n_oh)]
        in_specs += [_invariant_spec((h_pad, c_pad), single_buffer_weights)
                     for _ in range(n_levels)]

        # One concatenated lane-dense output slab; sliced per level afterwards.
        out_specs = pl.BlockSpec((tb, n_levels * c_pad), lambda i: (i, 0))
        out_shape = jax.ShapeDtypeStruct((b_pad, n_levels * c_pad), jnp.float32)

        vmem_est = (2 * tb * d_pad * cd                # x block (double-buffered)
                    + 2 * w_bytes                       # weights (upper bound)
                    + 2 * tb * n_levels * c_pad * 4     # out block (double-buffered)
                    + tb * c_pad * cd                   # one-hot scratch
                    + 2 * tb * n_levels * h_pad * 4)    # hx_all + temporaries
        vmem_limit = int(max(16 * 1024 * 1024,
                             min(vmem_cap - 12 * 1024 * 1024,
                                 max(32 * 1024 * 1024, 2 * vmem_est))))

        out = pl.pallas_call(
            fused_kernel,
            out_shape=out_shape,
            grid_spec=pltpu.PrefetchScalarGridSpec(
                num_scalar_prefetch=0,
                grid=(n_tiles,),
                in_specs=in_specs,
                out_specs=out_specs,
                scratch_shapes=[pltpu.VMEM((tb, c_pad), compute_dtype)],
            ),
            compiler_params=pltpu.CompilerParams(
                dimension_semantics=("parallel",),
                vmem_limit_bytes=vmem_limit,
            ),
            cost_estimate=pl.CostEstimate(
                flops=int(flops), transcendentals=0,
                bytes_accessed=int(bytes_accessed)),
        )(x_pad, w1x_all, bias, *w1oh, *w2)

        return [out[:batch, i * c_pad:i * c_pad + ls]
                for i, ls in enumerate(levels_size)]

    return jax.jit(forward)


# ----------------------------------------------------------------------------
# Pure-JAX reference of the same computation (same padded/bf16 params).
# ----------------------------------------------------------------------------
def reference_forward(x, params, levels_size, input_size, hidden_size,
                      compute_dtype=jnp.bfloat16):
    levels_size = tuple(int(s) for s in levels_size)
    d_pad = _round_up(input_size, 128)
    h_pad = _round_up(hidden_size, 128)
    c_pad = _round_up(max(levels_size), 128)
    batch = x.shape[0]

    x_pad = jnp.zeros((batch, d_pad), compute_dtype)
    x_pad = x_pad.at[:, :input_size].set(x.astype(compute_dtype))
    hx_all = jnp.dot(x_pad, params["w1x_all"],
                     preferred_element_type=jnp.float32)
    bias = params["bias"]

    onehot = None
    outs = []
    for i, ls in enumerate(levels_size):
        b1 = bias[2 * i:2 * i + 1, :h_pad]
        b2 = bias[2 * i + 1:2 * i + 2, :c_pad]
        h = hx_all[:, i * h_pad:(i + 1) * h_pad] + b1
        if i > 0:
            h = h + jnp.dot(onehot, params["w1oh"][i - 1],
                            preferred_element_type=jnp.float32)
        logits = jnp.dot(h.astype(compute_dtype), params["w2"][i],
                         preferred_element_type=jnp.float32) + b2
        outs.append(logits[:, :ls])
        idx = jnp.argmax(logits[:, :ls], axis=1)
        onehot = jax.nn.one_hot(idx, c_pad, dtype=compute_dtype)
    return outs


if __name__ == "__main__":
    # Small shapes consistent with the module's forward.
    batch = 2
    input_size = 32
    hidden_size = 16
    levels_size = (4, 6)

    key = jax.random.PRNGKey(0)
    key, kx, kp = jax.random.split(key, 3)
    x = jax.random.normal(kx, (batch, input_size), jnp.float32)

    params = init_params(kp, levels_size, input_size, hidden_size,
                         compute_dtype=jnp.bfloat16)

    fwd = make_hmc_forward(levels_size, input_size, hidden_size,
                           compute_dtype=jnp.bfloat16)
    try:
        outputs = fwd(x, params)
    except Exception:
        # Fallback: same kernel without single-buffered weight blocks, in case
        # this jax build rejects pl.Buffered(1) on pallas_call BlockSpecs.
        fwd = make_hmc_forward(levels_size, input_size, hidden_size,
                               compute_dtype=jnp.bfloat16,
                               single_buffer_weights=False)
        outputs = fwd(x, params)
    outputs = [jax.block_until_ready(o) for o in outputs]

    # Shape / dtype sanity.
    assert [o.shape for o in outputs] == [(batch, ls) for ls in levels_size]
    assert all(o.dtype == jnp.float32 for o in outputs)

    # Numerical check against a pure-JAX reference of the same computation.
    # NOTE: bf16 matmuls can in principle flip an argmax vs the f32 PyTorch
    # model when two logits are nearly tied; pass compute_dtype=jnp.float32 to
    # make_hmc_forward/init_params if exact decision-level parity is required.
    refs = reference_forward(x, params, levels_size, input_size, hidden_size,
                             compute_dtype=jnp.bfloat16)
    for o, r in zip(outputs, refs):
        assert bool(jnp.allclose(o, r, rtol=1e-2, atol=1e-2)), "mismatch vs reference"

    # TODO(synk): predict() (HMCDataset / DataLoader / per-level sigmoid loop) is
    # host-side inference plumbing, not part of the forward pass, so it is not kernelized.
    print("KERNEL_OK")
</pallas_src>

<mosaic_0001>
module attributes {stable_mosaic.version = 11 : i64} {
  func.func @fused_kernel(%arg0: i32, %arg1: memref<16x128xbf16, #tpu.memory_space<vmem>>, %arg2: memref<128x256xbf16, #tpu.memory_space<vmem>>, %arg3: memref<8x128xf32, #tpu.memory_space<vmem>>, %arg4: memref<128x128xbf16, #tpu.memory_space<vmem>>, %arg5: memref<128x128xbf16, #tpu.memory_space<vmem>>, %arg6: memref<128x128xbf16, #tpu.memory_space<vmem>>, %arg7: memref<16x256xf32, #tpu.memory_space<vmem>>, %arg8: memref<16x128xbf16, #tpu.memory_space<vmem>>) attributes {dimension_semantics = [#tpu.dimension_semantics<parallel>], iteration_bounds = array<i64: 1>, scalar_prefetch = 0 : i64, scratch_operands = 1 : i64, tpu.core_type = #tpu.core_type<tc>, window_params = [{transform_indices = @transform_0, window_bounds = array<i64: 16, 128>}, {pipeline_mode = #tpu.pipeline_mode<synchronous>, transform_indices = @transform_1, window_bounds = array<i64: 128, 256>}, {pipeline_mode = #tpu.pipeline_mode<synchronous>, transform_indices = @transform_2, window_bounds = array<i64: 8, 128>}, {pipeline_mode = #tpu.pipeline_mode<synchronous>, transform_indices = @transform_3, window_bounds = array<i64: 128, 128>}, {pipeline_mode = #tpu.pipeline_mode<synchronous>, transform_indices = @transform_4, window_bounds = array<i64: 128, 128>}, {pipeline_mode = #tpu.pipeline_mode<synchronous>, transform_indices = @transform_5, window_bounds = array<i64: 128, 128>}, {transform_indices = @transform_6, window_bounds = array<i64: 16, 256>}]} {
    %c0 = arith.constant 0 : index
    %c0_0 = arith.constant 0 : index
    %0 = vector.load %arg3[%c0, %c0_0] : memref<8x128xf32, #tpu.memory_space<vmem>>, vector<8x128xf32>
    %c0_1 = arith.constant 0 : index
    %c0_2 = arith.constant 0 : index
    %1 = vector.load %arg1[%c0_1, %c0_2] : memref<16x128xbf16, #tpu.memory_space<vmem>>, vector<16x128xbf16>
    %c0_3 = arith.constant 0 : index
    %c0_4 = arith.constant 0 : index
    %2 = vector.load %arg2[%c0_3, %c0_4] : memref<128x256xbf16, #tpu.memory_space<vmem>>, vector<128x256xbf16>
    %cst = arith.constant dense<0.000000e+00> : vector<16x256xf32>
    %3 = tpu.matmul %1, %2, %cst {dimension_numbers = #tpu.dot_dimension_numbers<[1], [0], [0], [1], [0, 0, 1, 1], [], []>} : vector<16x128xbf16>, vector<128x256xbf16>, vector<16x256xf32> -> vector<16x256xf32>
    %4 = tpu.iota {dimensions = array<i32: 1>} : vector<16x128xi32>
    %5 = vector.extract_strided_slice %0 {offsets = [0, 0], sizes = [1, 128], strides = [1, 1]} : vector<8x128xf32> to vector<1x128xf32>
    %6 = vector.extract_strided_slice %0 {offsets = [1, 0], sizes = [1, 128], strides = [1, 1]} : vector<8x128xf32> to vector<1x128xf32>
    %7 = vector.extract_strided_slice %3 {offsets = [0, 0], sizes = [16, 128], strides = [1, 1]} : vector<16x256xf32> to vector<16x128xf32>
    %8 = vector.broadcast %5 : vector<1x128xf32> to vector<16x128xf32>
    %9 = arith.addf %7, %8 : vector<16x128xf32>
    %10 = arith.truncf %9 : vector<16x128xf32> to vector<16x128xbf16>
    %c0_5 = arith.constant 0 : index
    %c0_6 = arith.constant 0 : index
    %11 = vector.load %arg5[%c0_5, %c0_6] : memref<128x128xbf16, #tpu.memory_space<vmem>>, vector<128x128xbf16>
    %cst_7 = arith.constant dense<0.000000e+00> : vector<16x128xf32>
    %12 = tpu.matmul %10, %11, %cst_7 {dimension_numbers = #tpu.dot_dimension_numbers<[1], [0], [0], [1], [0, 0, 1, 1], [], []>} : vector<16x128xbf16>, vector<128x128xbf16>, vector<16x128xf32> -> vector<16x128xf32>
    %13 = vector.broadcast %6 : vector<1x128xf32> to vector<16x128xf32>
    %14 = arith.addf %12, %13 : vector<16x128xf32>
    %c0_8 = arith.constant 0 : index
    %c0_9 = arith.constant 0 : index
    %15 = vector.load %arg7[%c0_8, %c0_9] : memref<16x256xf32, #tpu.memory_space<vmem>>, vector<16x128xf32>
    tpu.vector_store %arg7[%c0_8, %c0_9], %14 {strides = array<i32>} : memref<16x256xf32, #tpu.memory_space<vmem>>, vector<16x128xf32>,
    %c4_i32 = arith.constant 4 : i32
    %16 = vector.broadcast %c4_i32 : i32 to vector<16x128xi32>
    %17 = arith.cmpi slt, %4, %16 : vector<16x128xi32>
    %cst_10 = arith.constant 0xFF800000 : f32
    %18 = vector.broadcast %cst_10 : f32 to vector<16x128xf32>
    %19 = arith.select %17, %14, %18 : vector<16x128xi1>, vector<16x128xf32>
    %cst_11 = arith.constant dense<0xFF800000> : vector<16xf32>
    %20 = vector.multi_reduction <maximumf>, %19, %cst_11 [1] : vector<16x128xf32> to vector<16xf32>
    %21 = vector.shape_cast %20 : vector<16xf32> to vector<16x1xf32>
    %22 = vector.broadcast %21 : vector<16x1xf32> to vector<16x128xf32>
    %23 = arith.cmpf oeq, %19, %22 : vector<16x128xf32>
    %c128_i32 = arith.constant 128 : i32
    %24 = vector.broadcast %c128_i32 : i32 to vector<16x128xi32>
    %25 = arith.select %23, %4, %24 : vector<16x128xi1>, vector<16x128xi32>
    %cst_12 = arith.constant dense<2147483647> : vector<16xi32>
    %26 = vector.multi_reduction <minsi>, %25, %cst_12 [1] : vector<16x128xi32> to vector<16xi32>
    %27 = vector.shape_cast %26 : vector<16xi32> to vector<16x1xi32>
    %28 = vector.broadcast %27 : vector<16x1xi32> to vector<16x128xi32>
    %29 = arith.cmpi eq, %4, %28 : vector<16x128xi32>
    %30 = arith.extui %29 : vector<16x128xi1> to vector<16x128xi32>
    %31 = arith.sitofp %30 : vector<16x128xi32> to vector<16x128xf32>
    %32 = arith.truncf %31 : vector<16x128xf32> to vector<16x128xbf16>
    %c0_13 = arith.constant 0 : index
    %c0_14 = arith.constant 0 : index
    %33 = vector.load %arg8[%c0_13, %c0_14] : memref<16x128xbf16, #tpu.memory_space<vmem>>, vector<16x128xbf16>
    tpu.vector_store %arg8[%c0_13, %c0_14], %32 {strides = array<i32>} : memref<16x128xbf16, #tpu.memory_space<vmem>>, vector<16x128xbf16>,
    %34 = vector.extract_strided_slice %0 {offsets = [2, 0], sizes = [1, 128], strides = [1, 1]} : vector<8x128xf32> to vector<1x128xf32>
    %35 = vector.extract_strided_slice %0 {offsets = [3, 0], sizes = [1, 128], strides = [1, 1]} : vector<8x128xf32> to vector<1x128xf32>
    %36 = vector.extract_strided_slice %3 {offsets = [0, 128], sizes = [16, 128], strides = [1, 1]} : vector<16x256xf32> to vector<16x128xf32>
    %37 = vector.broadcast %34 : vector<1x128xf32> to vector<16x128xf32>
    %38 = arith.addf %36, %37 : vector<16x128xf32>
    %c0_15 = arith.constant 0 : index
    %c0_16 = arith.constant 0 : index
    %39 = vector.load %arg8[%c0_15, %c0_16] : memref<16x128xbf16, #tpu.memory_space<vmem>>, vector<16x128xbf16>
    %c0_17 = arith.constant 0 : index
    %c0_18 = arith.constant 0 : index
    %40 = vector.load %arg4[%c0_17, %c0_18] : memref<128x128xbf16, #tpu.memory_space<vmem>>, vector<128x128xbf16>
    %cst_19 = arith.constant dense<0.000000e+00> : vector<16x128xf32>
    %41 = tpu.matmul %39, %40, %cst_19 {dimension_numbers = #tpu.dot_dimension_numbers<[1], [0], [0], [1], [0, 0, 1, 1], [], []>} : vector<16x128xbf16>, vector<128x128xbf16>, vector<16x128xf32> -> vector<16x128xf32>
    %42 = arith.addf %38, %41 : vector<16x128xf32>
    %43 = arith.truncf %42 : vector<16x128xf32> to vector<16x128xbf16>
    %c0_20 = arith.constant 0 : index
    %c0_21 = arith.constant 0 : index
    %44 = vector.load %arg6[%c0_20, %c0_21] : memref<128x128xbf16, #tpu.memory_space<vmem>>, vector<128x128xbf16>
    %cst_22 = arith.constant dense<0.000000e+00> : vector<16x128xf32>
    %45 = tpu.matmul %43, %44, %cst_22 {dimension_numbers = #tpu.dot_dimension_numbers<[1], [0], [0], [1], [0, 0, 1, 1], [], []>} : vector<16x128xbf16>, vector<128x128xbf16>, vector<16x128xf32> -> vector<16x128xf32>
    %46 = vector.broadcast %35 : vector<1x128xf32> to vector<16x128xf32>
    %47 = arith.addf %45, %46 : vector<16x128xf32>
    %c0_23 = arith.constant 0 : index
    %c128 = arith.constant 128 : index
    %48 = vector.load %arg7[%c0_23, %c128] : memref<16x256xf32, #tpu.memory_space<vmem>>, vector<16x128xf32>
    tpu.vector_store %arg7[%c0_23, %c128], %47 {strides = array<i32>} : memref<16x256xf32, #tpu.memory_space<vmem>>, vector<16x128xf32>,
    return
  }
  func.func @transform_0(%arg0: i32) -> (i32, i32) {
    %c0_i32 = arith.constant 0 : i32
    %c0_i32_0 = arith.constant 0 : i32
    return %arg0, %c0_i32 : i32, i32
  }
  func.func @transform_1(%arg0: i32) -> (i32, i32) {
    %c0_i32 = arith.constant 0 : i32
    %c0_i32_0 = arith.constant 0 : i32
    %c0_i32_1 = arith.constant 0 : i32
    return %c0_i32, %c0_i32_0 : i32, i32
  }
  func.func @transform_2(%arg0: i32) -> (i32, i32) {
    %c0_i32 = arith.constant 0 : i32
    %c0_i32_0 = arith.constant 0 : i32
    %c0_i32_1 = arith.constant 0 : i32
    return %c0_i32, %c0_i32_0 : i32, i32
  }
  func.func @transform_3(%arg0: i32) -> (i32, i32) {
    %c0_i32 = arith.constant 0 : i32
    %c0_i32_0 = arith.constant 0 : i32
    %c0_i32_1 = arith.constant 0 : i32
    return %c0_i32, %c0_i32_0 : i32, i32
  }
  func.func @transform_4(%arg0: i32) -> (i32, i32) {
    %c0_i32 = arith.constant 0 : i32
    %c0_i32_0 = arith.constant 0 : i32
    %c0_i32_1 = arith.constant 0 : i32
    return %c0_i32, %c0_i32_0 : i32, i32
  }
  func.func @transform_5(%arg0: i32) -> (i32, i32) {
    %c0_i32 = arith.constant 0 : i32
    %c0_i32_0 = arith.constant 0 : i32
    %c0_i32_1 = arith.constant 0 : i32
    return %c0_i32, %c0_i32_0 : i32, i32
  }
  func.func @transform_6(%arg0: i32) -> (i32, i32) {
    %c0_i32 = arith.constant 0 : i32
    %c0_i32_0 = arith.constant 0 : i32
    return %arg0, %c0_i32 : i32, i32
  }
}

module attributes {stable_mosaic.version = 11 : i64} {
  func.func @fused_kernel(%arg0: i32, %arg1: memref<16x128xbf16, #tpu.memory_space<vmem>>, %arg2: memref<128x256xbf16, #tpu.memory_space<vmem>>, %arg3: memref<8x128xf32, #tpu.memory_space<vmem>>, %arg4: memref<128x128xbf16, #tpu.memory_space<vmem>>, %arg5: memref<128x128xbf16, #tpu.memory_space<vmem>>, %arg6: memref<128x128xbf16, #tpu.memory_space<vmem>>, %arg7: memref<16x256xf32, #tpu.memory_space<vmem>>, %arg8: memref<16x128xbf16, #tpu.memory_space<vmem>>) attributes {dimension_semantics = [#tpu.dimension_semantics<parallel>], iteration_bounds = array<i64: 1>, scalar_prefetch = 0 : i64, scratch_operands = 1 : i64, tpu.core_type = #tpu.core_type<tc>, window_params = [{transform_indices = @transform_0, window_bounds = array<i64: 16, 128>}, {pipeline_mode = #tpu.pipeline_mode<synchronous>, transform_indices = @transform_1, window_bounds = array<i64: 128, 256>}, {pipeline_mode = #tpu.pipeline_mode<synchronous>, transform_indices = @transform_2, window_bounds = array<i64: 8, 128>}, {pipeline_mode = #tpu.pipeline_mode<synchronous>, transform_indices = @transform_3, window_bounds = array<i64: 128, 128>}, {pipeline_mode = #tpu.pipeline_mode<synchronous>, transform_indices = @transform_4, window_bounds = array<i64: 128, 128>}, {pipeline_mode = #tpu.pipeline_mode<synchronous>, transform_indices = @transform_5, window_bounds = array<i64: 128, 128>}, {transform_indices = @transform_6, window_bounds = array<i64: 16, 256>}]} {
    %c0 = arith.constant 0 : index
    %c0_0 = arith.constant 0 : index
    %0 = vector.load %arg3[%c0, %c0_0] : memref<8x128xf32, #tpu.memory_space<vmem>>, vector<8x128xf32>
    %c0_1 = arith.constant 0 : index
    %c0_2 = arith.constant 0 : index
    %1 = vector.load %arg1[%c0_1, %c0_2] : memref<16x128xbf16, #tpu.memory_space<vmem>>, vector<16x128xbf16>
    %c0_3 = arith.constant 0 : index
    %c0_4 = arith.constant 0 : index
    %2 = vector.load %arg2[%c0_3, %c0_4] : memref<128x256xbf16, #tpu.memory_space<vmem>>, vector<128x256xbf16>
    %cst = arith.constant dense<0.000000e+00> : vector<16x256xf32>
    %3 = tpu.matmul %1, %2, %cst {dimension_numbers = #tpu.dot_dimension_numbers<[1], [0], [0], [1], [0, 0, 1, 1], [], []>} : vector<16x128xbf16>, vector<128x256xbf16>, vector<16x256xf32> -> vector<16x256xf32>
    %4 = tpu.iota {dimensions = array<i32: 1>} : vector<16x128xi32>
    %5 = vector.extract_strided_slice %0 {offsets = [0, 0], sizes = [1, 128], strides = [1, 1]} : vector<8x128xf32> to vector<1x128xf32>
    %6 = vector.extract_strided_slice %0 {offsets = [1, 0], sizes = [1, 128], strides = [1, 1]} : vector<8x128xf32> to vector<1x128xf32>
    %7 = vector.extract_strided_slice %3 {offsets = [0, 0], sizes = [16, 128], strides = [1, 1]} : vector<16x256xf32> to vector<16x128xf32>
    %8 = vector.broadcast %5 : vector<1x128xf32> to vector<16x128xf32>
    %9 = arith.addf %7, %8 : vector<16x128xf32>
    %10 = arith.truncf %9 : vector<16x128xf32> to vector<16x128xbf16>
    %c0_5 = arith.constant 0 : index
    %c0_6 = arith.constant 0 : index
    %11 = vector.load %arg5[%c0_5, %c0_6] : memref<128x128xbf16, #tpu.memory_space<vmem>>, vector<128x128xbf16>
    %cst_7 = arith.constant dense<0.000000e+00> : vector<16x128xf32>
    %12 = tpu.matmul %10, %11, %cst_7 {dimension_numbers = #tpu.dot_dimension_numbers<[1], [0], [0], [1], [0, 0, 1, 1], [], []>} : vector<16x128xbf16>, vector<128x128xbf16>, vector<16x128xf32> -> vector<16x128xf32>
    %13 = vector.broadcast %6 : vector<1x128xf32> to vector<16x128xf32>
    %14 = arith.addf %12, %13 : vector<16x128xf32>
    %c0_8 = arith.constant 0 : index
    %c0_9 = arith.constant 0 : index
    %15 = vector.load %arg7[%c0_8, %c0_9] : memref<16x256xf32, #tpu.memory_space<vmem>>, vector<16x128xf32>
    tpu.vector_store %arg7[%c0_8, %c0_9], %14 {strides = array<i32>} : memref<16x256xf32, #tpu.memory_space<vmem>>, vector<16x128xf32>,
    %c4_i32 = arith.constant 4 : i32
    %16 = vector.broadcast %c4_i32 : i32 to vector<16x128xi32>
    %17 = arith.cmpi slt, %4, %16 : vector<16x128xi32>
    %cst_10 = arith.constant 0xFF800000 : f32
    %18 = vector.broadcast %cst_10 : f32 to vector<16x128xf32>
    %19 = arith.select %17, %14, %18 : vector<16x128xi1>, vector<16x128xf32>
    %cst_11 = arith.constant dense<0xFF800000> : vector<16xf32>
    %20 = vector.multi_reduction <maximumf>, %19, %cst_11 [1] : vector<16x128xf32> to vector<16xf32>
    %21 = vector.shape_cast %20 : vector<16xf32> to vector<16x1xf32>
    %22 = vector.broadcast %21 : vector<16x1xf32> to vector<16x128xf32>
    %23 = arith.cmpf oeq, %19, %22 : vector<16x128xf32>
    %c128_i32 = arith.constant 128 : i32
    %24 = vector.broadcast %c128_i32 : i32 to vector<16x128xi32>
    %25 = arith.select %23, %4, %24 : vector<16x128xi1>, vector<16x128xi32>
    %cst_12 = arith.constant dense<2147483647> : vector<16xi32>
    %26 = vector.multi_reduction <minsi>, %25, %cst_12 [1] : vector<16x128xi32> to vector<16xi32>
    %27 = vector.shape_cast %26 : vector<16xi32> to vector<16x1xi32>
    %28 = vector.broadcast %27 : vector<16x1xi32> to vector<16x128xi32>
    %29 = arith.cmpi eq, %4, %28 : vector<16x128xi32>
    %30 = arith.extui %29 : vector<16x128xi1> to vector<16x128xi32>
    %31 = arith.sitofp %30 : vector<16x128xi32> to vector<16x128xf32>
    %32 = arith.truncf %31 : vector<16x128xf32> to vector<16x128xbf16>
    %c0_13 = arith.constant 0 : index
    %c0_14 = arith.constant 0 : index
    %33 = vector.load %arg8[%c0_13, %c0_14] : memref<16x128xbf16, #tpu.memory_space<vmem>>, vector<16x128xbf16>
    tpu.vector_store %arg8[%c0_13, %c0_14], %32 {strides = array<i32>} : memref<16x128xbf16, #tpu.memory_space<vmem>>, vector<16x128xbf16>,
    %34 = vector.extract_strided_slice %0 {offsets = [2, 0], sizes = [1, 128], strides = [1, 1]} : vector<8x128xf32> to vector<1x128xf32>
    %35 = vector.extract_strided_slice %0 {offsets = [3, 0], sizes = [1, 128], strides = [1, 1]} : vector<8x128xf32> to vector<1x128xf32>
    %36 = vector.extract_strided_slice %3 {offsets = [0, 128], sizes = [16, 128], strides = [1, 1]} : vector<16x256xf32> to vector<16x128xf32>
    %37 = vector.broadcast %34 : vector<1x128xf32> to vector<16x128xf32>
    %38 = arith.addf %36, %37 : vector<16x128xf32>
    %c0_15 = arith.constant 0 : index
    %c0_16 = arith.constant 0 : index
    %39 = vector.load %arg8[%c0_15, %c0_16] : memref<16x128xbf16, #tpu.memory_space<vmem>>, vector<16x128xbf16>
    %c0_17 = arith.constant 0 : index
    %c0_18 = arith.constant 0 : index
    %40 = vector.load %arg4[%c0_17, %c0_18] : memref<128x128xbf16, #tpu.memory_space<vmem>>, vector<128x128xbf16>
    %cst_19 = arith.constant dense<0.000000e+00> : vector<16x128xf32>
    %41 = tpu.matmul %39, %40, %cst_19 {dimension_numbers = #tpu.dot_dimension_numbers<[1], [0], [0], [1], [0, 0, 1, 1], [], []>} : vector<16x128xbf16>, vector<128x128xbf16>, vector<16x128xf32> -> vector<16x128xf32>
    %42 = arith.addf %38, %41 : vector<16x128xf32>
    %43 = arith.truncf %42 : vector<16x128xf32> to vector<16x128xbf16>
    %c0_20 = arith.constant 0 : index
    %c0_21 = arith.constant 0 : index
    %44 = vector.load %arg6[%c0_20, %c0_21] : memref<128x128xbf16, #tpu.memory_space<vmem>>, vector<128x128xbf16>
    %cst_22 = arith.constant dense<0.000000e+00> : vector<16x128xf32>
    %45 = tpu.matmul %43, %44, %cst_22 {dimension_numbers = #tpu.dot_dimension_numbers<[1], [0], [0], [1], [0, 0, 1, 1], [], []>} : vector<16x128xbf16>, vector<128x128xbf16>, vector<16x128xf32> -> vector<16x128xf32>
    %46 = vector.broadcast %35 : vector<1x128xf32> to vector<16x128xf32>
    %47 = arith.addf %45, %46 : vector<16x128xf32>
    %c0_23 = arith.constant 0 : index
    %c128 = arith.constant 128 : index
    %48 = vector.load %arg7[%c0_23, %c128] : memref<16x256xf32, #tpu.memory_space<vmem>>, vector<16x128xf32>
    tpu.vector_store %arg7[%c0_23, %c128], %47 {strides = array<i32>} : memref<16x256xf32, #tpu.memory_space<vmem>>, vector<16x128xf32>,
    return
  }
  func.func @transform_0(%arg0: i32) -> (i32, i32) {
    %c0_i32 = arith.constant 0 : i32
    %c0_i32_0 = arith.constant 0 : i32
    return %arg0, %c0_i32 : i32, i32
  }
  func.func @transform_1(%arg0: i32) -> (i32, i32) {
    %c0_i32 = arith.constant 0 : i32
    %c0_i32_0 = arith.constant 0 : i32
    %c0_i32_1 = arith.constant 0 : i32
    return %c0_i32, %c0_i32_0 : i32, i32
  }
  func.func @transform_2(%arg0: i32) -> (i32, i32) {
    %c0_i32 = arith.constant 0 : i32
    %c0_i32_0 = arith.constant 0 : i32
    %c0_i32_1 = arith.constant 0 : i32
    return %c0_i32, %c0_i32_0 : i32, i32
  }
  func.func @transform_3(%arg0: i32) -> (i32, i32) {
    %c0_i32 = arith.constant 0 : i32
    %c0_i32_0 = arith.constant 0 : i32
    %c0_i32_1 = arith.constant 0 : i32
    return %c0_i32, %c0_i32_0 : i32, i32
  }
  func.func @transform_4(%arg0: i32) -> (i32, i32) {
    %c0_i32 = arith.constant 0 : i32
    %c0_i32_0 = arith.constant 0 : i32
    %c0_i32_1 = arith.constant 0 : i32
    return %c0_i32, %c0_i32_0 : i32, i32
  }
  func.func @transform_5(%arg0: i32) -> (i32, i32) {
    %c0_i32 = arith.constant 0 : i32
    %c0_i32_0 = arith.constant 0 : i32
    %c0_i32_1 = arith.constant 0 : i32
    return %c0_i32, %c0_i32_0 : i32, i32
  }
  func.func @transform_6(%arg0: i32) -> (i32, i32) {
    %c0_i32 = arith.constant 0 : i32
    %c0_i32_0 = arith.constant 0 : i32
    return %arg0, %c0_i32 : i32, i32
  }
}

</mosaic_0001>

<llo_original>
// kernel: forward.1
$region0: #{forward.1}
  #allocation0 [shape = 'u32[]', space=smem, size = 0x4, offset = 0x4, fixed_abs, tag = 'smem constant byte address 0x4 - core index']
  #allocation1 [shape = 'u32[72,128]{1,0:T(1,128)}', space=vmem, size = 0x9000, scoped, tag = 'internal scratch']
  #allocation2 [shape = 'bf16[16,128]{1,0:T(8,128)(2,1)}', space=vmem, size = 0x1000, scoped, tag = 'scratch operand']
  %s0 = inlined_call_operand.vmem [shape: bf16[16,128], index: 0, kind: input, shape index: {}]
  %s1 = inlined_call_operand.hbm [shape: bf16[128,256], index: 1, kind: input, shape index: {}]
  %s2 = inlined_call_operand.vmem [shape: f32[8,128], index: 2, kind: input, shape index: {}]
  %s3 = inlined_call_operand.hbm [shape: bf16[128,128], index: 3, kind: input, shape index: {}]
  %s4 = inlined_call_operand.hbm [shape: bf16[128,128], index: 4, kind: input, shape index: {}]
  %s5 = inlined_call_operand.hbm [shape: bf16[128,128], index: 5, kind: input, shape index: {}]
  %s6 = inlined_call_operand.vmem [shape: f32[16,256], index: 6, kind: output, shape index: {}]
  %s7 = sld [smem:[#allocation0]]
  $region50: #{forward.1} parent=0
    _
  %s9 = ssub.s32 1, %s7
  %s10 = scalar_select 0, %s9, %s7
  $region1: #{forward.1} parent=0
    #allocation3 [shape = 'u8[65536]{0}', space=vmem, size = 0x10000, scoped, tag = 'input window, operand 1, single buffered']
    #allocation4 [shape = 's32[1]{0}', space=sflag, size = 0x4, scoped, tag = 'scoped memory for forward.1']
    #allocation5 [shape = 'u8[32768]{0}', space=vmem, size = 0x8000, scoped, tag = 'input window, operand 3, single buffered']
    #allocation6 [shape = 's32[1]{0}', space=sflag, size = 0x4, scoped, tag = 'scoped memory for forward.1']
    #allocation7 [shape = 'u8[32768]{0}', space=vmem, size = 0x8000, scoped, tag = 'input window, operand 4, single buffered']
    #allocation8 [shape = 'u8[32768]{0}', space=vmem, size = 0x8000, scoped, tag = 'input window, operand 5, single buffered']
    #allocation9 [shape = 's32[1]{0}', space=sflag, size = 0x4, scoped, tag = 'scoped memory for forward.1']
    %11 = vsyncpa [#allocation4], 0
    %12 = vsyncpa [#allocation6], 0
    %13 = vsyncpa [#allocation9], 0
    // Predicated region
    $region2: #{forward.1} parent=1 // pred_check
      _
    $region3: #{forward.1} parent=1 // pred_check_branch
      %15 = sbr.rel (0) target = $region5
    $region4: #{forward.1} parent=1 // pred_region
      _
    $region5: #{forward.1} parent=1 // pred_fallthru
      _
    // Predicated region
    $region6: #{forward.1} parent=1 // pred_check
      _
    $region7: #{forward.1} parent=1 // pred_check_branch
      %17 = sbr.rel (0) target = $region9
    $region8: #{forward.1} parent=1 // pred_region
      %19 = vsyncadd [#allocation4], 0
      %s20 = sshll.u32 %s1, 4
      %s21 = int_to_ptr.hbm [resolvable:$true] %s20
      %s22 = sshll.u32 [#allocation3], 4
      %s23 = int_to_ptr.vmem [resolvable:$true] %s22
      %28 = dma.hbm_to_vmem [thread:$0]  %s21, 2048, %s23, [#allocation4], 128, 128, 8
    $region9: #{forward.1} parent=1 // pred_fallthru
      _
    // Predicated region
    $region10: #{forward.1} parent=1 // pred_check
      _
    $region11: #{forward.1} parent=1 // pred_check_branch
      %30 = sbr.rel (0) target = $region13
    $region12: #{forward.1} parent=1 // pred_region
      _
    $region13: #{forward.1} parent=1 // pred_fallthru
      _
    // Predicated region
    $region14: #{forward.1} parent=1 // pred_check
      _
    $region15: #{forward.1} parent=1 // pred_check_branch
      %32 = sbr.rel (0) target = $region17
    $region16: #{forward.1} parent=1 // pred_region
      %34 = vsyncadd [#allocation6], 0
      %s35 = sshll.u32 %s3, 4
      %s36 = int_to_ptr.hbm [resolvable:$true] %s35
      %s37 = sshll.u32 [#allocation5], 4
      %s38 = int_to_ptr.vmem [resolvable:$true] %s37
      %43 = dma.hbm_to_vmem [thread:$0]  %s36, 1024, %s38, [#allocation6], 64, 64, 4
    $region17: #{forward.1} parent=1 // pred_fallthru
      _
    // Predicated region
    $region18: #{forward.1} parent=1 // pred_check
      _
    $region19: #{forward.1} parent=1 // pred_check_branch
      %45 = sbr.rel (0) target = $region21
    $region20: #{forward.1} parent=1 // pred_region
      %47 = vsyncadd [#allocation6], 0
      %s48 = sshll.u32 %s4, 4
      %s49 = int_to_ptr.hbm [resolvable:$true] %s48
      %s50 = sshll.u32 [#allocation7], 4
      %s51 = int_to_ptr.vmem [resolvable:$true] %s50
      %56 = dma.hbm_to_vmem [thread:$0]  %s49, 1024, %s51, [#allocation6], 64, 64, 4
    $region21: #{forward.1} parent=1 // pred_fallthru
      _
    // Predicated region
    $region22: #{forward.1} parent=1 // pred_check
      _
    $region23: #{forward.1} parent=1 // pred_check_branch
      %58 = sbr.rel (0) target = $region25
    $region24: #{forward.1} parent=1 // pred_region
      %60 = vsyncadd [#allocation9], 0
      %s61 = sshll.u32 %s5, 4
      %s62 = int_to_ptr.hbm [resolvable:$true] %s61
      %s63 = sshll.u32 [#allocation8], 4
      %s64 = int_to_ptr.vmem [resolvable:$true] %s63
      %69 = dma.hbm_to_vmem [thread:$0]  %s62, 1024, %s64, [#allocation9], 64, 64, 4
    $region25: #{forward.1} parent=1 // pred_fallthru
      _
    // Predicated region
    $region26: #{forward.1} parent=1 // pred_check
      _
    $region27: #{forward.1} parent=1 // pred_check_branch
      %71 = sbr.rel (0) target = $region29
    $region28: #{forward.1} parent=1 // pred_region
      %73 = dma.done [#allocation4], 2048
    $region29: #{forward.1} parent=1 // pred_fallthru
      _
    // Predicated region
    $region30: #{forward.1} parent=1 // pred_check
      _
    $region31: #{forward.1} parent=1 // pred_check_branch
      %75 = sbr.rel (0) target = $region33
    $region32: #{forward.1} parent=1 // pred_region
      %77 = dma.done [#allocation6], 1024
    $region33: #{forward.1} parent=1 // pred_fallthru
      _
    // Predicated region
    $region34: #{forward.1} parent=1 // pred_check
      _
    $region35: #{forward.1} parent=1 // pred_check_branch
      %79 = sbr.rel (0) target = $region37
    $region36: #{forward.1} parent=1 // pred_region
      %81 = dma.done [#allocation6], 1024
    $region37: #{forward.1} parent=1 // pred_fallthru
      _
    // Predicated region
    $region38: #{forward.1} parent=1 // pred_check
      _
    $region39: #{forward.1} parent=1 // pred_check_branch
      %83 = sbr.rel (0) target = $region41
    $region40: #{forward.1} parent=1 // pred_region
      %85 = dma.done [#allocation9], 1024
    $region41: #{forward.1} parent=1 // pred_fallthru
      _
    %v86 = vld [vmem:[%s2] sm:$0xff]
    %v87 = vld [vmem:[%s0] sm:$0xf]
    %v88 = vld [vmem:[%s0 + $0x4] sm:$0xf]
    %v89 = vld [vmem:[#allocation3] sm:$0xff]
    %v90 = vld [vmem:[#allocation3 + $0x8] sm:$0xff]
    %v91 = vld [vmem:[#allocation3 + $0x10] sm:$0xff]
    %v92 = vld [vmem:[#allocation3 + $0x18] sm:$0xff]
    %v93 = vld [vmem:[#allocation3 + $0x20] sm:$0xff]
    %v94 = vld [vmem:[#allocation3 + $0x28] sm:$0xff]
    %v95 = vld [vmem:[#allocation3 + $0x30] sm:$0xff]
    %v96 = vld [vmem:[#allocation3 + $0x38] sm:$0xff]
    %v97 = vld [vmem:[#allocation3 + $0x40] sm:$0xff]
    %v98 = vld [vmem:[#allocation3 + $0x48] sm:$0xff]
    %v99 = vld [vmem:[#allocation3 + $0x50] sm:$0xff]
    %v100 = vld [vmem:[#allocation3 + $0x58] sm:$0xff]
    %v101 = vld [vmem:[#allocation3 + $0x60] sm:$0xff]
    %v102 = vld [vmem:[#allocation3 + $0x68] sm:$0xff]
    %v103 = vld [vmem:[#allocation3 + $0x70] sm:$0xff]
    %v104 = vld [vmem:[#allocation3 + $0x78] sm:$0xff]
    %v107 = vunpack.c.l.b16 %v87
    %v108 = vunpack.c.l.b16 %v88
    %v109 = vpack.c.b16 %v108, %v107
    %v127 = vunpack.c.l.b16 %v89
    %v128 = vunpack.c.h.b16 %v89
    %v129 = vunpack.c.l.b16 %v90
    %v130 = vunpack.c.h.b16 %v90
    %v131 = vunpack.c.l.b16 %v91
    %v132 = vunpack.c.h.b16 %v91
    %v133 = vunpack.c.l.b16 %v92
    %v134 = vunpack.c.h.b16 %v92
    %v135 = vunpack.c.l.b16 %v93
    %v136 = vunpack.c.h.b16 %v93
    %v137 = vunpack.c.l.b16 %v94
    %v138 = vunpack.c.h.b16 %v94
    %v139 = vunpack.c.l.b16 %v95
    %v140 = vunpack.c.h.b16 %v95
    %v141 = vunpack.c.l.b16 %v96
    %v142 = vunpack.c.h.b16 %v96
    %v143 = vunpack.c.l.b16 %v97
    %v144 = vunpack.c.h.b16 %v97
    %v145 = vunpack.c.l.b16 %v98
    %v146 = vunpack.c.h.b16 %v98
    %v147 = vunpack.c.l.b16 %v99
    %v148 = vunpack.c.h.b16 %v99
    %v149 = vunpack.c.l.b16 %v100
    %v150 = vunpack.c.h.b16 %v100
    %v151 = vunpack.c.l.b16 %v101
    %v152 = vunpack.c.h.b16 %v101
    %v153 = vunpack.c.l.b16 %v102
    %v154 = vunpack.c.h.b16 %v102
    %v155 = vunpack.c.l.b16 %v103
    %v156 = vunpack.c.h.b16 %v103
    %v157 = vunpack.c.l.b16 %v104
    %v158 = vunpack.c.h.b16 %v104
    %v159 = vpack.c.b16 %v129, %v127
    %v160 = vpack.c.b16 %v130, %v128
    %v161 = vpack.c.b16 %v133, %v131
    %v162 = vpack.c.b16 %v134, %v132
    %v163 = vpack.c.b16 %v137, %v135
    %v164 = vpack.c.b16 %v138, %v136
    %v165 = vpack.c.b16 %v141, %v139
    %v166 = vpack.c.b16 %v142, %v140
    %v167 = vpack.c.b16 %v145, %v143
    %v168 = vpack.c.b16 %v146, %v144
    %v169 = vpack.c.b16 %v149, %v147
    %v170 = vpack.c.b16 %v150, %v148
    %v171 = vpack.c.b16 %v153, %v151
    %v172 = vpack.c.b16 %v154, %v152
    %v173 = vpack.c.b16 %v157, %v155
    %v174 = vpack.c.b16 %v158, %v156
    %191 = vmatpush.bf16.msra.mxu0 %v173
    %192 = vmatpush.bf16.msra.mxu0 %v171
    %193 = vmatpush.bf16.msra.mxu0 %v169
    %194 = vmatpush.bf16.msra.mxu0 %v167
    %195 = vmatpush.bf16.msra.mxu0 %v165
    %196 = vmatpush.bf16.msra.mxu0 %v163
    %197 = vmatpush.bf16.msra.mxu0 %v161
    %198 = vmatpush.bf16.msra.mxu0 %v159
    %199 = vmatmul.bf16.gmra.mxu0 %v109
    %v200 = vpop.f32.mrf.mxu0
    %v201 = vadd.f32 0.0, %v200
    %v202 = vpop.f32.mrf.mxu0
    %v203 = vadd.f32 0.0, %v202
    %204 = vdwg.mxu0
    %205 = vmatpush.bf16.msra.mxu0 %v174
    %206 = vmatpush.bf16.msra.mxu0 %v172
    %207 = vmatpush.bf16.msra.mxu0 %v170
    %208 = vmatpush.bf16.msra.mxu0 %v168
    %209 = vmatpush.bf16.msra.mxu0 %v166
    %210 = vmatpush.bf16.msra.mxu0 %v164
    %211 = vmatpush.bf16.msra.mxu0 %v162
    %212 = vmatpush.bf16.msra.mxu0 %v160
    %213 = vmatmul.bf16.gmra.mxu0 %v109
    %v214 = vpop.f32.mrf.mxu0
    %v215 = vadd.f32 0.0, %v214
    %v216 = vpop.f32.mrf.mxu0
    %v217 = vadd.f32 0.0, %v216
    %218 = vdwg.mxu0
    %v219 = vlaneseq
    %v220 = vand.u32 %v219, 127
    %v221 = vperm.slane %v86, 0
    %v222 = vadd.f32 %v201, %v221
    %v223 = vadd.f32 %v203, %v221
    %v224 = vpack.c.bf16 %v223, %v222
    %v225 = vld [vmem:[#allocation7] sm:$0xf]
    %v226 = vld [vmem:[#allocation7 + $0x4] sm:$0xf]
    %v227 = vld [vmem:[#allocation7 + $0x8] sm:$0xf]
    %v228 = vld [vmem:[#allocation7 + $0xc] sm:$0xf]
    %v229 = vld [vmem:[#allocation7 + $0x10] sm:$0xf]
    %v230 = vld [vmem:[#allocation7 + $0x14] sm:$0xf]
    %v231 = vld [vmem:[#allocation7 + $0x18] sm:$0xf]
    %v232 = vld [vmem:[#allocation7 + $0x1c] sm:$0xf]
    %v233 = vld [vmem:[#allocation7 + $0x20] sm:$0xf]
    %v234 = vld [vmem:[#allocation7 + $0x24] sm:$0xf]
    %v235 = vld [vmem:[#allocation7 + $0x28] sm:$0xf]
    %v236 = vld [vmem:[#allocation7 + $0x2c] sm:$0xf]
    %v237 = vld [vmem:[#allocation7 + $0x30] sm:$0xf]
    %v238 = vld [vmem:[#allocation7 + $0x34] sm:$0xf]
    %v239 = vld [vmem:[#allocation7 + $0x38] sm:$0xf]
    %v240 = vld [vmem:[#allocation7 + $0x3c] sm:$0xf]
    %v241 = vperm.slane %v86, 1
    %v258 = vunpack.c.l.b16 %v225
    %v259 = vunpack.c.l.b16 %v226
    %v260 = vunpack.c.l.b16 %v227
    %v261 = vunpack.c.l.b16 %v228
    %v262 = vunpack.c.l.b16 %v229
    %v263 = vunpack.c.l.b16 %v230
    %v264 = vunpack.c.l.b16 %v231
    %v265 = vunpack.c.l.b16 %v232
    %v266 = vunpack.c.l.b16 %v233
    %v267 = vunpack.c.l.b16 %v234
    %v268 = vunpack.c.l.b16 %v235
    %v269 = vunpack.c.l.b16 %v236
    %v270 = vunpack.c.l.b16 %v237
    %v271 = vunpack.c.l.b16 %v238
    %v272 = vunpack.c.l.b16 %v239
    %v273 = vunpack.c.l.b16 %v240
    %v274 = vpack.c.b16 %v259, %v258
    %v275 = vpack.c.b16 %v261, %v260
    %v276 = vpack.c.b16 %v263, %v262
    %v277 = vpack.c.b16 %v265, %v264
    %v278 = vpack.c.b16 %v267, %v266
    %v279 = vpack.c.b16 %v269, %v268
    %v280 = vpack.c.b16 %v271, %v270
    %v281 = vpack.c.b16 %v273, %v272
    %290 = vmatpush.bf16.msra.mxu0 %v281
    %291 = vmatpush.bf16.msra.mxu0 %v280
    %292 = vmatpush.bf16.msra.mxu0 %v279
    %293 = vmatpush.bf16.msra.mxu0 %v278
    %294 = vmatpush.bf16.msra.mxu0 %v277
    %295 = vmatpush.bf16.msra.mxu0 %v276
    %296 = vmatpush.bf16.msra.mxu0 %v275
    %297 = vmatpush.bf16.msra.mxu0 %v274
    %298 = vmatmul.bf16.gmra.mxu0 %v224
    %v299 = vpop.f32.mrf.mxu0
    %v300 = vadd.f32 %v241, %v299
    %v301 = vpop.f32.mrf.mxu0
    %v302 = vadd.f32 %v241, %v301
    %303 = vdwg.mxu0
    %304 = vst [vmem:[%s6] sm:$0xff] %v300
    %305 = vst [vmem:[%s6 + $0x10] sm:$0xff] %v302
    %vm306 = vcmp.lt.s32.totalorder %v220, 4
    %v307 = vsel %vm306, %v300, -inf
    %v308 = vsel %vm306, %v302, -inf
    %309 = vmax.xlane.f32.xlu0 %v307
    %v310 = vpop.xlane.xlu0 %309
    %311 = vmax.xlane.f32.xlu0 %v308
    %v312 = vpop.xlane.xlu0 %311
    %vm313 = vcmp.eq.f32.partialorder %v307, %v310
    %vm314 = vcmp.eq.f32.partialorder %v308, %v312
    %v315 = vsel %vm313, %v220, 128
    %v316 = vsel %vm314, %v220, 128
    %v317 = vand.u32 %v315, 65535
    %v318 = vshra.s32 %v315, 16
    %v319 = vcvt.s32.f32 %v317
    %v320 = vcvt.s32.f32 %v318
    %321 = vmin.xlane.f32.xlu0 %v320
    %v322 = vpop.xlane.xlu0 %321
    %vm323 = vcmp.eq.f32.partialorder %v320, %v322
    %v324 = vsel %vm323, %v319, inf
    %325 = vmin.xlane.f32.xlu0 %v324
    %v326 = vpop.xlane.xlu0 %325
    %v327 = vcvt.f32.s32 %v326
    %v328 = vcvt.f32.s32 %v322
    %v329 = vshll.u32 %v328, 16
    %v330 = vadd.s32 %v329, %v327
    %v331 = vand.u32 %v316, 65535
    %v332 = vshra.s32 %v316, 16
    %v333 = vcvt.s32.f32 %v331
    %v334 = vcvt.s32.f32 %v332
    %335 = vmin.xlane.f32.xlu0 %v334
    %v336 = vpop.xlane.xlu0 %335
    %vm337 = vcmp.eq.f32.partialorder %v334, %v336
    %v338 = vsel %vm337, %v333, inf
    %339 = vmin.xlane.f32.xlu0 %v338
    %v340 = vpop.xlane.xlu0 %339
    %v341 = vcvt.f32.s32 %v340
    %v342 = vcvt.f32.s32 %v336
    %v343 = vshll.u32 %v342, 16
    %v344 = vadd.s32 %v343, %v341
    %vm345 = vcmp.eq.s32.totalorder %v220, %v330
    %vm346 = vcmp.eq.s32.totalorder %v220, %v344
    %v347 = vsel %vm345, 1, 0
    %v348 = vsel %vm346, 1, 0
    %v349 = vcvt.s32.f32 %v347
    %v350 = vcvt.s32.f32 %v348
    %v351 = vpack.c.bf16 %v349, %v349
    %v352 = vpack.c.bf16 %v350, %v350
    %353 = vst [vmem:[#allocation2] sm:$0xf] %v351
    %354 = vst [vmem:[#allocation2 + $0x4] sm:$0xf] %v352
    %v355 = vperm.slane %v86, 2
    %v356 = vadd.f32 %v215, %v355
    %v357 = vadd.f32 %v217, %v355
    %v358 = vld [vmem:[#allocation2] sm:$0xf]
    %v359 = vld [vmem:[#allocation2 + $0x4] sm:$0xf]
    %v360 = vld [vmem:[#allocation5] sm:$0xf]
    %v361 = vld [vmem:[#allocation5 + $0x4] sm:$0xf]
    %v362 = vld [vmem:[#allocation5 + $0x8] sm:$0xf]
    %v363 = vld [vmem:[#allocation5 + $0xc] sm:$0xf]
    %v364 = vld [vmem:[#allocation5 + $0x10] sm:$0xf]
    %v365 = vld [vmem:[#allocation5 + $0x14] sm:$0xf]
    %v366 = vld [vmem:[#allocation5 + $0x18] sm:$0xf]
    %v367 = vld [vmem:[#allocation5 + $0x1c] sm:$0xf]
    %v368 = vld [vmem:[#allocation5 + $0x20] sm:$0xf]
    %v369 = vld [vmem:[#allocation5 + $0x24] sm:$0xf]
    %v370 = vld [vmem:[#allocation5 + $0x28] sm:$0xf]
    %v371 = vld [vmem:[#allocation5 + $0x2c] sm:$0xf]
    %v372 = vld [vmem:[#allocation5 + $0x30] sm:$0xf]
    %v373 = vld [vmem:[#allocation5 + $0x34] sm:$0xf]
    %v374 = vld [vmem:[#allocation5 + $0x38] sm:$0xf]
    %v375 = vld [vmem:[#allocation5 + $0x3c] sm:$0xf]
    %v378 = vunpack.c.l.b16 %v358
    %v379 = vunpack.c.l.b16 %v359
    %v380 = vpack.c.b16 %v379, %v378
    %v398 = vunpack.c.l.b16 %v360
    %v399 = vunpack.c.l.b16 %v361
    %v400 = vunpack.c.l.b16 %v362
    %v401 = vunpack.c.l.b16 %v363
    %v402 = vunpack.c.l.b16 %v364
    %v403 = vunpack.c.l.b16 %v365
    %v404 = vunpack.c.l.b16 %v366
    %v405 = vunpack.c.l.b16 %v367
    %v406 = vunpack.c.l.b16 %v368
    %v407 = vunpack.c.l.b16 %v369
    %v408 = vunpack.c.l.b16 %v370
    %v409 = vunpack.c.l.b16 %v371
    %v410 = vunpack.c.l.b16 %v372
    %v411 = vunpack.c.l.b16 %v373
    %v412 = vunpack.c.l.b16 %v374
    %v413 = vunpack.c.l.b16 %v375
    %v414 = vpack.c.b16 %v399, %v398
    %v415 = vpack.c.b16 %v401, %v400
    %v416 = vpack.c.b16 %v403, %v402
    %v417 = vpack.c.b16 %v405, %v404
    %v418 = vpack.c.b16 %v407, %v406
    %v419 = vpack.c.b16 %v409, %v408
    %v420 = vpack.c.b16 %v411, %v410
    %v421 = vpack.c.b16 %v413, %v412
    %430 = vmatpush.bf16.msra.mxu0 %v421
    %431 = vmatpush.bf16.msra.mxu0 %v420
    %432 = vmatpush.bf16.msra.mxu0 %v419
    %433 = vmatpush.bf16.msra.mxu0 %v418
    %434 = vmatpush.bf16.msra.mxu0 %v417
    %435 = vmatpush.bf16.msra.mxu0 %v416
    %436 = vmatpush.bf16.msra.mxu0 %v415
    %437 = vmatpush.bf16.msra.mxu0 %v414
    %438 = vmatmul.bf16.gmra.mxu0 %v380
    %v439 = vpop.f32.mrf.mxu0
    %v440 = vadd.f32 0.0, %v439
    %v441 = vpop.f32.mrf.mxu0
    %v442 = vadd.f32 0.0, %v441
    %443 = vdwg.mxu0
    %v444 = vadd.f32 %v356, %v440
    %v445 = vadd.f32 %v357, %v442
    %v446 = vpack.c.bf16 %v445, %v444
    %v447 = vld [vmem:[#allocation8] sm:$0xf]
    %v448 = vld [vmem:[#allocation8 + $0x4] sm:$0xf]
    %v449 = vld [vmem:[#allocation8 + $0x8] sm:$0xf]
    %v450 = vld [vmem:[#allocation8 + $0xc] sm:$0xf]
    %v451 = vld [vmem:[#allocation8 + $0x10] sm:$0xf]
    %v452 = vld [vmem:[#allocation8 + $0x14] sm:$0xf]
    %v453 = vld [vmem:[#allocation8 + $0x18] sm:$0xf]
    %v454 = vld [vmem:[#allocation8 + $0x1c] sm:$0xf]
    %v455 = vld [vmem:[#allocation8 + $0x20] sm:$0xf]
    %v456 = vld [vmem:[#allocation8 + $0x24] sm:$0xf]
    %v457 = vld [vmem:[#allocation8 + $0x28] sm:$0xf]
    %v458 = vld [vmem:[#allocation8 + $0x2c] sm:$0xf]
    %v459 = vld [vmem:[#allocation8 + $0x30] sm:$0xf]
    %v460 = vld [vmem:[#allocation8 + $0x34] sm:$0xf]
    %v461 = vld [vmem:[#allocation8 + $0x38] sm:$0xf]
    %v462 = vld [vmem:[#allocation8 + $0x3c] sm:$0xf]
    %v463 = vperm.slane %v86, 3
    %v480 = vunpack.c.l.b16 %v447
    %v481 = vunpack.c.l.b16 %v448
    %v482 = vunpack.c.l.b16 %v449
    %v483 = vunpack.c.l.b16 %v450
    %v484 = vunpack.c.l.b16 %v451
    %v485 = vunpack.c.l.b16 %v452
    %v486 = vunpack.c.l.b16 %v453
    %v487 = vunpack.c.l.b16 %v454
    %v488 = vunpack.c.l.b16 %v455
    %v489 = vunpack.c.l.b16 %v456
    %v490 = vunpack.c.l.b16 %v457
    %v491 = vunpack.c.l.b16 %v458
    %v492 = vunpack.c.l.b16 %v459
    %v493 = vunpack.c.l.b16 %v460
    %v494 = vunpack.c.l.b16 %v461
    %v495 = vunpack.c.l.b16 %v462
    %v496 = vpack.c.b16 %v481, %v480
    %v497 = vpack.c.b16 %v483, %v482
    %v498 = vpack.c.b16 %v485, %v484
    %v499 = vpack.c.b16 %v487, %v486
    %v500 = vpack.c.b16 %v489, %v488
    %v501 = vpack.c.b16 %v491, %v490
    %v502 = vpack.c.b16 %v493, %v492
    %v503 = vpack.c.b16 %v495, %v494
    %512 = vmatpush.bf16.msra.mxu0 %v503
    %513 = vmatpush.bf16.msra.mxu0 %v502
    %514 = vmatpush.bf16.msra.mxu0 %v501
    %515 = vmatpush.bf16.msra.mxu0 %v500
    %516 = vmatpush.bf16.msra.mxu0 %v499
    %517 = vmatpush.bf16.msra.mxu0 %v498
    %518 = vmatpush.bf16.msra.mxu0 %v497
    %519 = vmatpush.bf16.msra.mxu0 %v496
    %520 = vmatmul.bf16.gmra.mxu0 %v446
    %v521 = vpop.f32.mrf.mxu0
    %v522 = vadd.f32 %v463, %v521
    %v523 = vpop.f32.mrf.mxu0
    %v524 = vadd.f32 %v463, %v523
    %525 = vdwg.mxu0
    %526 = vst [vmem:[%s6 + $0x8] sm:$0xff] %v522
    %527 = vst [vmem:[%s6 + $0x18] sm:$0xff] %v524
    // Predicated region
    $region42: #{forward.1} parent=1 // pred_check
      _
    $region43: #{forward.1} parent=1 // pred_check_branch
      %529 = sbr.rel (0) target = $region45
    $region44: #{forward.1} parent=1 // pred_region
      _
    $region45: #{forward.1} parent=1 // pred_fallthru
      _
    // Predicated region
    $region46: #{forward.1} parent=1 // pred_check
      _
    $region47: #{forward.1} parent=1 // pred_check_branch
      %531 = sbr.rel (0) target = $region49
    $region48: #{forward.1} parent=1 // pred_region
      _
    $region49: #{forward.1} parent=1 // pred_fallthru
      _
    %532 = vsyncpa [#allocation4], 1
    %533 = vsyncpa [#allocation6], 1
    %534 = vsyncpa [#allocation9], 1

// kernel: forward.1
$region0: #{forward.1}
  #allocation0 [shape = 'u32[]', space=smem, size = 0x4, offset = 0x4, fixed_abs, tag = 'smem constant byte address 0x4 - core index']
  #allocation1 [shape = 'u32[72,128]{1,0:T(1,128)}', space=vmem, size = 0x9000, scoped, tag = 'internal scratch']
  #allocation2 [shape = 'bf16[16,128]{1,0:T(8,128)(2,1)}', space=vmem, size = 0x1000, scoped, tag = 'scratch operand']
  %s0 = inlined_call_operand.vmem [shape: bf16[16,128], index: 0, kind: input, shape index: {}]
  %s1 = inlined_call_operand.hbm [shape: bf16[128,256], index: 1, kind: input, shape index: {}]
  %s2 = inlined_call_operand.vmem [shape: f32[8,128], index: 2, kind: input, shape index: {}]
  %s3 = inlined_call_operand.hbm [shape: bf16[128,128], index: 3, kind: input, shape index: {}]
  %s4 = inlined_call_operand.hbm [shape: bf16[128,128], index: 4, kind: input, shape index: {}]
  %s5 = inlined_call_operand.hbm [shape: bf16[128,128], index: 5, kind: input, shape index: {}]
  %s6 = inlined_call_operand.vmem [shape: f32[16,256], index: 6, kind: output, shape index: {}]
  %s7 = sld [smem:[#allocation0]]
  $region50: #{forward.1} parent=0
    _
  %s9 = ssub.s32 1, %s7
  %s10 = scalar_select 0, %s9, %s7
  $region1: #{forward.1} parent=0
    #allocation3 [shape = 'u8[65536]{0}', space=vmem, size = 0x10000, scoped, tag = 'input window, operand 1, single buffered']
    #allocation4 [shape = 's32[1]{0}', space=sflag, size = 0x4, scoped, tag = 'scoped memory for forward.1']
    #allocation5 [shape = 'u8[32768]{0}', space=vmem, size = 0x8000, scoped, tag = 'input window, operand 3, single buffered']
    #allocation6 [shape = 's32[1]{0}', space=sflag, size = 0x4, scoped, tag = 'scoped memory for forward.1']
    #allocation7 [shape = 'u8[32768]{0}', space=vmem, size = 0x8000, scoped, tag = 'input window, operand 4, single buffered']
    #allocation8 [shape = 'u8[32768]{0}', space=vmem, size = 0x8000, scoped, tag = 'input window, operand 5, single buffered']
    #allocation9 [shape = 's32[1]{0}', space=sflag, size = 0x4, scoped, tag = 'scoped memory for forward.1']
    %11 = vsyncpa [#allocation4], 0
    %12 = vsyncpa [#allocation6], 0
    %13 = vsyncpa [#allocation9], 0
    // Predicated region
    $region2: #{forward.1} parent=1 // pred_check
      _
    $region3: #{forward.1} parent=1 // pred_check_branch
      %15 = sbr.rel (0) target = $region5
    $region4: #{forward.1} parent=1 // pred_region
      _
    $region5: #{forward.1} parent=1 // pred_fallthru
      _
    // Predicated region
    $region6: #{forward.1} parent=1 // pred_check
      _
    $region7: #{forward.1} parent=1 // pred_check_branch
      %17 = sbr.rel (0) target = $region9
    $region8: #{forward.1} parent=1 // pred_region
      %19 = vsyncadd [#allocation4], 0
      %s20 = sshll.u32 %s1, 4
      %s21 = int_to_ptr.hbm [resolvable:$true] %s20
      %s22 = sshll.u32 [#allocation3], 4
      %s23 = int_to_ptr.vmem [resolvable:$true] %s22
      %28 = dma.hbm_to_vmem [thread:$0]  %s21, 2048, %s23, [#allocation4], 128, 128, 8
    $region9: #{forward.1} parent=1 // pred_fallthru
      _
    // Predicated region
    $region10: #{forward.1} parent=1 // pred_check
      _
    $region11: #{forward.1} parent=1 // pred_check_branch
      %30 = sbr.rel (0) target = $region13
    $region12: #{forward.1} parent=1 // pred_region
      _
    $region13: #{forward.1} parent=1 // pred_fallthru
      _
    // Predicated region
    $region14: #{forward.1} parent=1 // pred_check
      _
    $region15: #{forward.1} parent=1 // pred_check_branch
      %32 = sbr.rel (0) target = $region17
    $region16: #{forward.1} parent=1 // pred_region
      %34 = vsyncadd [#allocation6], 0
      %s35 = sshll.u32 %s3, 4
      %s36 = int_to_ptr.hbm [resolvable:$true] %s35
      %s37 = sshll.u32 [#allocation5], 4
      %s38 = int_to_ptr.vmem [resolvable:$true] %s37
      %43 = dma.hbm_to_vmem [thread:$0]  %s36, 1024, %s38, [#allocation6], 64, 64, 4
    $region17: #{forward.1} parent=1 // pred_fallthru
      _
    // Predicated region
    $region18: #{forward.1} parent=1 // pred_check
      _
    $region19: #{forward.1} parent=1 // pred_check_branch
      %45 = sbr.rel (0) target = $region21
    $region20: #{forward.1} parent=1 // pred_region
      %47 = vsyncadd [#allocation6], 0
      %s48 = sshll.u32 %s4, 4
      %s49 = int_to_ptr.hbm [resolvable:$true] %s48
      %s50 = sshll.u32 [#allocation7], 4
      %s51 = int_to_ptr.vmem [resolvable:$true] %s50
      %56 = dma.hbm_to_vmem [thread:$0]  %s49, 1024, %s51, [#allocation6], 64, 64, 4
    $region21: #{forward.1} parent=1 // pred_fallthru
      _
    // Predicated region
    $region22: #{forward.1} parent=1 // pred_check
      _
    $region23: #{forward.1} parent=1 // pred_check_branch
      %58 = sbr.rel (0) target = $region25
    $region24: #{forward.1} parent=1 // pred_region
      %60 = vsyncadd [#allocation9], 0
      %s61 = sshll.u32 %s5, 4
      %s62 = int_to_ptr.hbm [resolvable:$true] %s61
      %s63 = sshll.u32 [#allocation8], 4
      %s64 = int_to_ptr.vmem [resolvable:$true] %s63
      %69 = dma.hbm_to_vmem [thread:$0]  %s62, 1024, %s64, [#allocation9], 64, 64, 4
    $region25: #{forward.1} parent=1 // pred_fallthru
      _
    // Predicated region
    $region26: #{forward.1} parent=1 // pred_check
      _
    $region27: #{forward.1} parent=1 // pred_check_branch
      %71 = sbr.rel (0) target = $region29
    $region28: #{forward.1} parent=1 // pred_region
      %73 = dma.done [#allocation4], 2048
    $region29: #{forward.1} parent=1 // pred_fallthru
      _
    // Predicated region
    $region30: #{forward.1} parent=1 // pred_check
      _
    $region31: #{forward.1} parent=1 // pred_check_branch
      %75 = sbr.rel (0) target = $region33
    $region32: #{forward.1} parent=1 // pred_region
      %77 = dma.done [#allocation6], 1024
    $region33: #{forward.1} parent=1 // pred_fallthru
      _
    // Predicated region
    $region34: #{forward.1} parent=1 // pred_check
      _
    $region35: #{forward.1} parent=1 // pred_check_branch
      %79 = sbr.rel (0) target = $region37
    $region36: #{forward.1} parent=1 // pred_region
      %81 = dma.done [#allocation6], 1024
    $region37: #{forward.1} parent=1 // pred_fallthru
      _
    // Predicated region
    $region38: #{forward.1} parent=1 // pred_check
      _
    $region39: #{forward.1} parent=1 // pred_check_branch
      %83 = sbr.rel (0) target = $region41
    $region40: #{forward.1} parent=1 // pred_region
      %85 = dma.done [#allocation9], 1024
    $region41: #{forward.1} parent=1 // pred_fallthru
      _
    %v86 = vld [vmem:[%s2] sm:$0xff]
    %v87 = vld [vmem:[%s0] sm:$0xf]
    %v88 = vld [vmem:[%s0 + $0x4] sm:$0xf]
    %v89 = vld [vmem:[#allocation3] sm:$0xff]
    %v90 = vld [vmem:[#allocation3 + $0x8] sm:$0xff]
    %v91 = vld [vmem:[#allocation3 + $0x10] sm:$0xff]
    %v92 = vld [vmem:[#allocation3 + $0x18] sm:$0xff]
    %v93 = vld [vmem:[#allocation3 + $0x20] sm:$0xff]
    %v94 = vld [vmem:[#allocation3 + $0x28] sm:$0xff]
    %v95 = vld [vmem:[#allocation3 + $0x30] sm:$0xff]
    %v96 = vld [vmem:[#allocation3 + $0x38] sm:$0xff]
    %v97 = vld [vmem:[#allocation3 + $0x40] sm:$0xff]
    %v98 = vld [vmem:[#allocation3 + $0x48] sm:$0xff]
    %v99 = vld [vmem:[#allocation3 + $0x50] sm:$0xff]
    %v100 = vld [vmem:[#allocation3 + $0x58] sm:$0xff]
    %v101 = vld [vmem:[#allocation3 + $0x60] sm:$0xff]
    %v102 = vld [vmem:[#allocation3 + $0x68] sm:$0xff]
    %v103 = vld [vmem:[#allocation3 + $0x70] sm:$0xff]
    %v104 = vld [vmem:[#allocation3 + $0x78] sm:$0xff]
    %v107 = vunpack.c.l.b16 %v87
    %v108 = vunpack.c.l.b16 %v88
    %v109 = vpack.c.b16 %v108, %v107
    %v127 = vunpack.c.l.b16 %v89
    %v128 = vunpack.c.h.b16 %v89
    %v129 = vunpack.c.l.b16 %v90
    %v130 = vunpack.c.h.b16 %v90
    %v131 = vunpack.c.l.b16 %v91
    %v132 = vunpack.c.h.b16 %v91
    %v133 = vunpack.c.l.b16 %v92
    %v134 = vunpack.c.h.b16 %v92
    %v135 = vunpack.c.l.b16 %v93
    %v136 = vunpack.c.h.b16 %v93
    %v137 = vunpack.c.l.b16 %v94
    %v138 = vunpack.c.h.b16 %v94
    %v139 = vunpack.c.l.b16 %v95
    %v140 = vunpack.c.h.b16 %v95
    %v141 = vunpack.c.l.b16 %v96
    %v142 = vunpack.c.h.b16 %v96
    %v143 = vunpack.c.l.b16 %v97
    %v144 = vunpack.c.h.b16 %v97
    %v145 = vunpack.c.l.b16 %v98
    %v146 = vunpack.c.h.b16 %v98
    %v147 = vunpack.c.l.b16 %v99
    %v148 = vunpack.c.h.b16 %v99
    %v149 = vunpack.c.l.b16 %v100
    %v150 = vunpack.c.h.b16 %v100
    %v151 = vunpack.c.l.b16 %v101
    %v152 = vunpack.c.h.b16 %v101
    %v153 = vunpack.c.l.b16 %v102
    %v154 = vunpack.c.h.b16 %v102
    %v155 = vunpack.c.l.b16 %v103
    %v156 = vunpack.c.h.b16 %v103
    %v157 = vunpack.c.l.b16 %v104
    %v158 = vunpack.c.h.b16 %v104
    %v159 = vpack.c.b16 %v129, %v127
    %v160 = vpack.c.b16 %v130, %v128
    %v161 = vpack.c.b16 %v133, %v131
    %v162 = vpack.c.b16 %v134, %v132
    %v163 = vpack.c.b16 %v137, %v135
    %v164 = vpack.c.b16 %v138, %v136
    %v165 = vpack.c.b16 %v141, %v139
    %v166 = vpack.c.b16 %v142, %v140
    %v167 = vpack.c.b16 %v145, %v143
    %v168 = vpack.c.b16 %v146, %v144
    %v169 = vpack.c.b16 %v149, %v147
    %v170 = vpack.c.b16 %v150, %v148
    %v171 = vpack.c.b16 %v153, %v151
    %v172 = vpack.c.b16 %v154, %v152
    %v173 = vpack.c.b16 %v157, %v155
    %v174 = vpack.c.b16 %v158, %v156
    %191 = vmatpush.bf16.msra.mxu0 %v173
    %192 = vmatpush.bf16.msra.mxu0 %v171
    %193 = vmatpush.bf16.msra.mxu0 %v169
    %194 = vmatpush.bf16.msra.mxu0 %v167
    %195 = vmatpush.bf16.msra.mxu0 %v165
    %196 = vmatpush.bf16.msra.mxu0 %v163
    %197 = vmatpush.bf16.msra.mxu0 %v161
    %198 = vmatpush.bf16.msra.mxu0 %v159
    %199 = vmatmul.bf16.gmra.mxu0 %v109
    %v200 = vpop.f32.mrf.mxu0
    %v201 = vadd.f32 0.0, %v200
    %v202 = vpop.f32.mrf.mxu0
    %v203 = vadd.f32 0.0, %v202
    %204 = vdwg.mxu0
    %205 = vmatpush.bf16.msra.mxu0 %v174
    %206 = vmatpush.bf16.msra.mxu0 %v172
    %207 = vmatpush.bf16.msra.mxu0 %v170
    %208 = vmatpush.bf16.msra.mxu0 %v168
    %209 = vmatpush.bf16.msra.mxu0 %v166
    %210 = vmatpush.bf16.msra.mxu0 %v164
    %211 = vmatpush.bf16.msra.mxu0 %v162
    %212 = vmatpush.bf16.msra.mxu0 %v160
    %213 = vmatmul.bf16.gmra.mxu0 %v109
    %v214 = vpop.f32.mrf.mxu0
    %v215 = vadd.f32 0.0, %v214
    %v216 = vpop.f32.mrf.mxu0
    %v217 = vadd.f32 0.0, %v216
    %218 = vdwg.mxu0
    %v219 = vlaneseq
    %v220 = vand.u32 %v219, 127
    %v221 = vperm.slane %v86, 0
    %v222 = vadd.f32 %v201, %v221
    %v223 = vadd.f32 %v203, %v221
    %v224 = vpack.c.bf16 %v223, %v222
    %v225 = vld [vmem:[#allocation7] sm:$0xf]
    %v226 = vld [vmem:[#allocation7 + $0x4] sm:$0xf]
    %v227 = vld [vmem:[#allocation7 + $0x8] sm:$0xf]
    %v228 = vld [vmem:[#allocation7 + $0xc] sm:$0xf]
    %v229 = vld [vmem:[#allocation7 + $0x10] sm:$0xf]
    %v230 = vld [vmem:[#allocation7 + $0x14] sm:$0xf]
    %v231 = vld [vmem:[#allocation7 + $0x18] sm:$0xf]
    %v232 = vld [vmem:[#allocation7 + $0x1c] sm:$0xf]
    %v233 = vld [vmem:[#allocation7 + $0x20] sm:$0xf]
    %v234 = vld [vmem:[#allocation7 + $0x24] sm:$0xf]
    %v235 = vld [vmem:[#allocation7 + $0x28] sm:$0xf]
    %v236 = vld [vmem:[#allocation7 + $0x2c] sm:$0xf]
    %v237 = vld [vmem:[#allocation7 + $0x30] sm:$0xf]
    %v238 = vld [vmem:[#allocation7 + $0x34] sm:$0xf]
    %v239 = vld [vmem:[#allocation7 + $0x38] sm:$0xf]
    %v240 = vld [vmem:[#allocation7 + $0x3c] sm:$0xf]
    %v241 = vperm.slane %v86, 1
    %v258 = vunpack.c.l.b16 %v225
    %v259 = vunpack.c.l.b16 %v226
    %v260 = vunpack.c.l.b16 %v227
    %v261 = vunpack.c.l.b16 %v228
    %v262 = vunpack.c.l.b16 %v229
    %v263 = vunpack.c.l.b16 %v230
    %v264 = vunpack.c.l.b16 %v231
    %v265 = vunpack.c.l.b16 %v232
    %v266 = vunpack.c.l.b16 %v233
    %v267 = vunpack.c.l.b16 %v234
    %v268 = vunpack.c.l.b16 %v235
    %v269 = vunpack.c.l.b16 %v236
    %v270 = vunpack.c.l.b16 %v237
    %v271 = vunpack.c.l.b16 %v238
    %v272 = vunpack.c.l.b16 %v239
    %v273 = vunpack.c.l.b16 %v240
    %v274 = vpack.c.b16 %v259, %v258
    %v275 = vpack.c.b16 %v261, %v260
    %v276 = vpack.c.b16 %v263, %v262
    %v277 = vpack.c.b16 %v265, %v264
    %v278 = vpack.c.b16 %v267, %v266
    %v279 = vpack.c.b16 %v269, %v268
    %v280 = vpack.c.b16 %v271, %v270
    %v281 = vpack.c.b16 %v273, %v272
    %290 = vmatpush.bf16.msra.mxu0 %v281
    %291 = vmatpush.bf16.msra.mxu0 %v280
    %292 = vmatpush.bf16.msra.mxu0 %v279
    %293 = vmatpush.bf16.msra.mxu0 %v278
    %294 = vmatpush.bf16.msra.mxu0 %v277
    %295 = vmatpush.bf16.msra.mxu0 %v276
    %296 = vmatpush.bf16.msra.mxu0 %v275
    %297 = vmatpush.bf16.msra.mxu0 %v274
    %298 = vmatmul.bf16.gmra.mxu0 %v224
    %v299 = vpop.f32.mrf.mxu0
    %v300 = vadd.f32 %v241, %v299
    %v301 = vpop.f32.mrf.mxu0
    %v302 = vadd.f32 %v241, %v301
    %303 = vdwg.mxu0
    %304 = vst [vmem:[%s6] sm:$0xff] %v300
    %305 = vst [vmem:[%s6 + $0x10] sm:$0xff] %v302
    %vm306 = vcmp.lt.s32.totalorder %v220, 4
    %v307 = vsel %vm306, %v300, -inf
    %v308 = vsel %vm306, %v302, -inf
    %309 = vmax.xlane.f32.xlu0 %v307
    %v310 = vpop.xlane.xlu0 %309
    %311 = vmax.xlane.f32.xlu0 %v308
    %v312 = vpop.xlane.xlu0 %311
    %vm313 = vcmp.eq.f32.partialorder %v307, %v310
    %vm314 = vcmp.eq.f32.partialorder %v308, %v312
    %v315 = vsel %vm313, %v220, 128
    %v316 = vsel %vm314, %v220, 128
    %v317 = vand.u32 %v315, 65535
    %v318 = vshra.s32 %v315, 16
    %v319 = vcvt.s32.f32 %v317
    %v320 = vcvt.s32.f32 %v318
    %321 = vmin.xlane.f32.xlu0 %v320
    %v322 = vpop.xlane.xlu0 %321
    %vm323 = vcmp.eq.f32.partialorder %v320, %v322
    %v324 = vsel %vm323, %v319, inf
    %325 = vmin.xlane.f32.xlu0 %v324
    %v326 = vpop.xlane.xlu0 %325
    %v327 = vcvt.f32.s32 %v326
    %v328 = vcvt.f32.s32 %v322
    %v329 = vshll.u32 %v328, 16
    %v330 = vadd.s32 %v329, %v327
    %v331 = vand.u32 %v316, 65535
    %v332 = vshra.s32 %v316, 16
    %v333 = vcvt.s32.f32 %v331
    %v334 = vcvt.s32.f32 %v332
    %335 = vmin.xlane.f32.xlu0 %v334
    %v336 = vpop.xlane.xlu0 %335
    %vm337 = vcmp.eq.f32.partialorder %v334, %v336
    %v338 = vsel %vm337, %v333, inf
    %339 = vmin.xlane.f32.xlu0 %v338
    %v340 = vpop.xlane.xlu0 %339
    %v341 = vcvt.f32.s32 %v340
    %v342 = vcvt.f32.s32 %v336
    %v343 = vshll.u32 %v342, 16
    %v344 = vadd.s32 %v343, %v341
    %vm345 = vcmp.eq.s32.totalorder %v220, %v330
    %vm346 = vcmp.eq.s32.totalorder %v220, %v344
    %v347 = vsel %vm345, 1, 0
    %v348 = vsel %vm346, 1, 0
    %v349 = vcvt.s32.f32 %v347
    %v350 = vcvt.s32.f32 %v348
    %v351 = vpack.c.bf16 %v349, %v349
    %v352 = vpack.c.bf16 %v350, %v350
    %353 = vst [vmem:[#allocation2] sm:$0xf] %v351
    %354 = vst [vmem:[#allocation2 + $0x4] sm:$0xf] %v352
    %v355 = vperm.slane %v86, 2
    %v356 = vadd.f32 %v215, %v355
    %v357 = vadd.f32 %v217, %v355
    %v358 = vld [vmem:[#allocation2] sm:$0xf]
    %v359 = vld [vmem:[#allocation2 + $0x4] sm:$0xf]
    %v360 = vld [vmem:[#allocation5] sm:$0xf]
    %v361 = vld [vmem:[#allocation5 + $0x4] sm:$0xf]
    %v362 = vld [vmem:[#allocation5 + $0x8] sm:$0xf]
    %v363 = vld [vmem:[#allocation5 + $0xc] sm:$0xf]
    %v364 = vld [vmem:[#allocation5 + $0x10] sm:$0xf]
    %v365 = vld [vmem:[#allocation5 + $0x14] sm:$0xf]
    %v366 = vld [vmem:[#allocation5 + $0x18] sm:$0xf]
    %v367 = vld [vmem:[#allocation5 + $0x1c] sm:$0xf]
    %v368 = vld [vmem:[#allocation5 + $0x20] sm:$0xf]
    %v369 = vld [vmem:[#allocation5 + $0x24] sm:$0xf]
    %v370 = vld [vmem:[#allocation5 + $0x28] sm:$0xf]
    %v371 = vld [vmem:[#allocation5 + $0x2c] sm:$0xf]
    %v372 = vld [vmem:[#allocation5 + $0x30] sm:$0xf]
    %v373 = vld [vmem:[#allocation5 + $0x34] sm:$0xf]
    %v374 = vld [vmem:[#allocation5 + $0x38] sm:$0xf]
    %v375 = vld [vmem:[#allocation5 + $0x3c] sm:$0xf]
    %v378 = vunpack.c.l.b16 %v358
    %v379 = vunpack.c.l.b16 %v359
    %v380 = vpack.c.b16 %v379, %v378
    %v398 = vunpack.c.l.b16 %v360
    %v399 = vunpack.c.l.b16 %v361
    %v400 = vunpack.c.l.b16 %v362
    %v401 = vunpack.c.l.b16 %v363
    %v402 = vunpack.c.l.b16 %v364
    %v403 = vunpack.c.l.b16 %v365
    %v404 = vunpack.c.l.b16 %v366
    %v405 = vunpack.c.l.b16 %v367
    %v406 = vunpack.c.l.b16 %v368
    %v407 = vunpack.c.l.b16 %v369
    %v408 = vunpack.c.l.b16 %v370
    %v409 = vunpack.c.l.b16 %v371
    %v410 = vunpack.c.l.b16 %v372
    %v411 = vunpack.c.l.b16 %v373
    %v412 = vunpack.c.l.b16 %v374
    %v413 = vunpack.c.l.b16 %v375
    %v414 = vpack.c.b16 %v399, %v398
    %v415 = vpack.c.b16 %v401, %v400
    %v416 = vpack.c.b16 %v403, %v402
    %v417 = vpack.c.b16 %v405, %v404
    %v418 = vpack.c.b16 %v407, %v406
    %v419 = vpack.c.b16 %v409, %v408
    %v420 = vpack.c.b16 %v411, %v410
    %v421 = vpack.c.b16 %v413, %v412
    %430 = vmatpush.bf16.msra.mxu0 %v421
    %431 = vmatpush.bf16.msra.mxu0 %v420
    %432 = vmatpush.bf16.msra.mxu0 %v419
    %433 = vmatpush.bf16.msra.mxu0 %v418
    %434 = vmatpush.bf16.msra.mxu0 %v417
    %435 = vmatpush.bf16.msra.mxu0 %v416
    %436 = vmatpush.bf16.msra.mxu0 %v415
    %437 = vmatpush.bf16.msra.mxu0 %v414
    %438 = vmatmul.bf16.gmra.mxu0 %v380
    %v439 = vpop.f32.mrf.mxu0
    %v440 = vadd.f32 0.0, %v439
    %v441 = vpop.f32.mrf.mxu0
    %v442 = vadd.f32 0.0, %v441
    %443 = vdwg.mxu0
    %v444 = vadd.f32 %v356, %v440
    %v445 = vadd.f32 %v357, %v442
    %v446 = vpack.c.bf16 %v445, %v444
    %v447 = vld [vmem:[#allocation8] sm:$0xf]
    %v448 = vld [vmem:[#allocation8 + $0x4] sm:$0xf]
    %v449 = vld [vmem:[#allocation8 + $0x8] sm:$0xf]
    %v450 = vld [vmem:[#allocation8 + $0xc] sm:$0xf]
    %v451 = vld [vmem:[#allocation8 + $0x10] sm:$0xf]
    %v452 = vld [vmem:[#allocation8 + $0x14] sm:$0xf]
    %v453 = vld [vmem:[#allocation8 + $0x18] sm:$0xf]
    %v454 = vld [vmem:[#allocation8 + $0x1c] sm:$0xf]
    %v455 = vld [vmem:[#allocation8 + $0x20] sm:$0xf]
    %v456 = vld [vmem:[#allocation8 + $0x24] sm:$0xf]
    %v457 = vld [vmem:[#allocation8 + $0x28] sm:$0xf]
    %v458 = vld [vmem:[#allocation8 + $0x2c] sm:$0xf]
    %v459 = vld [vmem:[#allocation8 + $0x30] sm:$0xf]
    %v460 = vld [vmem:[#allocation8 + $0x34] sm:$0xf]
    %v461 = vld [vmem:[#allocation8 + $0x38] sm:$0xf]
    %v462 = vld [vmem:[#allocation8 + $0x3c] sm:$0xf]
    %v463 = vperm.slane %v86, 3
    %v480 = vunpack.c.l.b16 %v447
    %v481 = vunpack.c.l.b16 %v448
    %v482 = vunpack.c.l.b16 %v449
    %v483 = vunpack.c.l.b16 %v450
    %v484 = vunpack.c.l.b16 %v451
    %v485 = vunpack.c.l.b16 %v452
    %v486 = vunpack.c.l.b16 %v453
    %v487 = vunpack.c.l.b16 %v454
    %v488 = vunpack.c.l.b16 %v455
    %v489 = vunpack.c.l.b16 %v456
    %v490 = vunpack.c.l.b16 %v457
    %v491 = vunpack.c.l.b16 %v458
    %v492 = vunpack.c.l.b16 %v459
    %v493 = vunpack.c.l.b16 %v460
    %v494 = vunpack.c.l.b16 %v461
    %v495 = vunpack.c.l.b16 %v462
    %v496 = vpack.c.b16 %v481, %v480
    %v497 = vpack.c.b16 %v483, %v482
    %v498 = vpack.c.b16 %v485, %v484
    %v499 = vpack.c.b16 %v487, %v486
    %v500 = vpack.c.b16 %v489, %v488
    %v501 = vpack.c.b16 %v491, %v490
    %v502 = vpack.c.b16 %v493, %v492
    %v503 = vpack.c.b16 %v495, %v494
    %512 = vmatpush.bf16.msra.mxu0 %v503
    %513 = vmatpush.bf16.msra.mxu0 %v502
    %514 = vmatpush.bf16.msra.mxu0 %v501
    %515 = vmatpush.bf16.msra.mxu0 %v500
    %516 = vmatpush.bf16.msra.mxu0 %v499
    %517 = vmatpush.bf16.msra.mxu0 %v498
    %518 = vmatpush.bf16.msra.mxu0 %v497
    %519 = vmatpush.bf16.msra.mxu0 %v496
    %520 = vmatmul.bf16.gmra.mxu0 %v446
    %v521 = vpop.f32.mrf.mxu0
    %v522 = vadd.f32 %v463, %v521
    %v523 = vpop.f32.mrf.mxu0
    %v524 = vadd.f32 %v463, %v523
    %525 = vdwg.mxu0
    %526 = vst [vmem:[%s6 + $0x8] sm:$0xff] %v522
    %527 = vst [vmem:[%s6 + $0x18] sm:$0xff] %v524
    // Predicated region
    $region42: #{forward.1} parent=1 // pred_check
      _
    $region43: #{forward.1} parent=1 // pred_check_branch
      %529 = sbr.rel (0) target = $region45
    $region44: #{forward.1} parent=1 // pred_region
      _
    $region45: #{forward.1} parent=1 // pred_fallthru
      _
    // Predicated region
    $region46: #{forward.1} parent=1 // pred_check
      _
    $region47: #{forward.1} parent=1 // pred_check_branch
      %531 = sbr.rel (0) target = $region49
    $region48: #{forward.1} parent=1 // pred_region
      _
    $region49: #{forward.1} parent=1 // pred_fallthru
      _
    %532 = vsyncpa [#allocation4], 1
    %533 = vsyncpa [#allocation6], 1
    %534 = vsyncpa [#allocation9], 1

</llo_original>
